<compile_context>
chip_gen: v7x
topology: tpu7x:2x2x1
jax: 0.10.0
libtpu: 0.0.40
codegen_flags: <defaults>
</compile_context>

<pallas_src>
import functools

import jax
import jax.numpy as jnp
from jax.experimental import pallas as pl
from jax.experimental.pallas import tpu as pltpu

BN_EPS = 1e-5


def _attn_gate_kernel(gate_ref, skip_ref, wgT_ref, wsT_ref, wa_ref, b_ref,
                      ba_ref, out_ref):
    """One (batch, spatial-tile) grid step, channel-major layout.

    gate_ref: [Cg, tn]   skip_ref: [Cs, tn]   (io dtype, spatial in lanes)
    wgT_ref : [Ci, Cg]   wsT_ref : [Ci, Cs]   (io dtype, BN scale folded in)
    wa_ref  : [Ci, 1]    b_ref   : [Ci, 1]    (f32, BN folded in)
    ba_ref  : [1] f32 scalar in SMEM (attention bias + BN, folded)
    out_ref : [Cs, tn]
    """
    s = skip_ref[...]

    # 1x1 convs as channel matmuls on the MXU (f32 accumulation).
    gt = jnp.dot(wgT_ref[...], gate_ref[...],
                 preferred_element_type=jnp.float32)            # [Ci, tn]
    st = jnp.dot(wsT_ref[...], s,
                 preferred_element_type=jnp.float32)            # [Ci, tn]

    # ReLU(gate_transformed + skip_transformed); folded BN shifts in b.
    comb = jnp.maximum(gt + st + b_ref[...], 0.0)               # [Ci, tn]

    # Attention 1x1 conv (out_channels=1) as a VPU multiply + sublane reduce
    # (avoids an N=1 MXU matmul), then folded bias/BN + sigmoid.
    logit = jnp.sum(comb * wa_ref[...], axis=0, keepdims=True) + ba_ref[0]
    att = jax.nn.sigmoid(logit)                                 # [1, tn]

    # attended skip = skip * attention (broadcast over skip channels).
    out_ref[...] = (s.astype(jnp.float32) * att).astype(out_ref.dtype)


def _fold_bn(gamma, beta, mean, var, eps=BN_EPS):
    scale = gamma / jnp.sqrt(var + eps)
    shift = beta - mean * scale
    return scale, shift


@functools.partial(jax.jit, static_argnames=("tn",))
def attention_gate(gate_nchw, skip_nchw, params, *, tn=1024):
    """AttentionGate.forward.  NCHW in, NCHW out ([B, Cs, Hs, Ws])."""
    B, Cs, Hs, Ws = skip_nchw.shape
    _, Cg, Hg, Wg = gate_nchw.shape
    Ci = params["wg"].shape[1]
    io_dtype = skip_nchw.dtype

    # Glue inherent to the module: bilinear upsample of the gate to the skip's
    # spatial size (matches F.interpolate(mode='bilinear', align_corners=False)).
    if (Hg, Wg) != (Hs, Ws):
        gate_nchw = jax.image.resize(gate_nchw, (B, Cg, Hs, Ws), method="bilinear")

    # Trace-time fold of eval-mode BatchNorm + attention-conv bias into the
    # weights: the kernel only sees 2 weight matrices, 1 weight column,
    # 1 bias column and 1 scalar.
    gsc, gsh = _fold_bn(params["g_gamma"], params["g_beta"],
                        params["g_mean"], params["g_var"])
    ssc, ssh = _fold_bn(params["s_gamma"], params["s_beta"],
                        params["s_mean"], params["s_var"])
    asc, ash = _fold_bn(params["a_gamma"], params["a_beta"],
                        params["a_mean"], params["a_var"])
    wgT = (params["wg"] * gsc).T.astype(io_dtype)               # [Ci, Cg]
    wsT = (params["ws"] * ssc).T.astype(io_dtype)               # [Ci, Cs]
    bias = (gsh + ssh).reshape(Ci, 1).astype(jnp.float32)       # [Ci, 1]
    wa = (params["wa"] * asc).astype(jnp.float32)               # [Ci, 1]
    b_a = (params["a_bias"] * asc + ash).astype(jnp.float32)    # [1]

    # NCHW -> [B, C, H*W] is a free reshape (row-major contiguous): spatial
    # lands in the lane axis, channels in the sublane axis.
    HW = Hs * Ws
    gate_r = gate_nchw.astype(io_dtype).reshape(B, Cg, HW)
    skip_r = skip_nchw.reshape(B, Cs, HW)

    # Spatial tile: large to amortize per-step overhead; multiple of 128 lanes
    # when tiling.  Ragged last tile handled by the pl.cdiv grid (no jnp.pad).
    tn_eff = min(tn, HW)
    if tn_eff < HW:
        tn_eff = max(128, (tn_eff // 128) * 128)
    grid = (B, pl.cdiv(HW, tn_eff))

    const = lambda b, t: (0, 0)
    out = pl.pallas_call(
        _attn_gate_kernel,
        out_shape=jax.ShapeDtypeStruct((B, Cs, HW), io_dtype),
        grid_spec=pltpu.PrefetchScalarGridSpec(
            num_scalar_prefetch=0,
            grid=grid,
            in_specs=[
                pl.BlockSpec((None, Cg, tn_eff), lambda b, t: (b, 0, t)),
                pl.BlockSpec((None, Cs, tn_eff), lambda b, t: (b, 0, t)),
                # Weights: constant index_map -> resident across the grid.
                # TODO(synk): pipeline_mode=pl.Buffered(1) on these would halve
                # their VMEM footprint on v7x once verified on the target jax.
                pl.BlockSpec((Ci, Cg), const),
                pl.BlockSpec((Ci, Cs), const),
                pl.BlockSpec((Ci, 1), const),
                pl.BlockSpec((Ci, 1), const),
                # Lone scalar goes through the scalar path (SMEM), not a
                # padded (8,128) vreg tile.
                pl.BlockSpec(memory_space=pltpu.MemorySpace.SMEM),
            ],
            out_specs=pl.BlockSpec((None, Cs, tn_eff), lambda b, t: (b, 0, t)),
        ),
        compiler_params=pltpu.CompilerParams(
            dimension_semantics=("parallel", "parallel"),
            vmem_limit_bytes=48 * 1024 * 1024,   # above 16/32 MiB defaults,
        ),                                       # headroom on v7x's 64 MiB
    )(gate_r, skip_r, wgT, wsT, wa, bias, b_a)

    return out.reshape(B, Cs, Hs, Ws)


def _reference_jax(gate_nchw, skip_nchw, params):
    """Pure-JAX reference (unfused, mirrors the PyTorch module structure)."""
    B, Cs, Hs, Ws = skip_nchw.shape
    _, Cg, Hg, Wg = gate_nchw.shape
    if (Hg, Wg) != (Hs, Ws):
        gate_nchw = jax.image.resize(gate_nchw, (B, Cg, Hs, Ws), method="bilinear")
    g = jnp.transpose(gate_nchw, (0, 2, 3, 1)).reshape(-1, Cg)
    s = jnp.transpose(skip_nchw, (0, 2, 3, 1)).reshape(-1, Cs)
    gsc, gsh = _fold_bn(params["g_gamma"], params["g_beta"], params["g_mean"], params["g_var"])
    ssc, ssh = _fold_bn(params["s_gamma"], params["s_beta"], params["s_mean"], params["s_var"])
    asc, ash = _fold_bn(params["a_gamma"], params["a_beta"], params["a_mean"], params["a_var"])
    gt = g @ params["wg"] * gsc + gsh
    st = s @ params["ws"] * ssc + ssh
    comb = jnp.maximum(gt + st, 0.0)
    a = jax.nn.sigmoid((comb @ params["wa"] + params["a_bias"]) * asc + ash)
    out = (s * a).reshape(B, Hs, Ws, Cs)
    return jnp.transpose(out, (0, 3, 1, 2))


def make_params(key, gate_channels, skip_channels, inter_channels=None):
    if inter_channels is None:
        inter_channels = skip_channels // 2
    ks = jax.random.split(key, 12)
    f32 = jnp.float32
    return {
        # 1x1 conv weights, stored as [C_in, C_out]
        "wg": jax.random.normal(ks[0], (gate_channels, inter_channels), f32) * 0.3,
        "ws": jax.random.normal(ks[1], (skip_channels, inter_channels), f32) * 0.3,
        "wa": jax.random.normal(ks[2], (inter_channels, 1), f32) * 0.3,
        "a_bias": jax.random.normal(ks[3], (1,), f32) * 0.1,
        # BatchNorm params (eval mode / running stats)
        "g_gamma": 1.0 + 0.1 * jax.random.normal(ks[4], (inter_channels,), f32),
        "g_beta": 0.1 * jax.random.normal(ks[5], (inter_channels,), f32),
        "g_mean": 0.05 * jax.random.normal(ks[6], (inter_channels,), f32),
        "g_var": 1.0 + 0.1 * jnp.abs(jax.random.normal(ks[7], (inter_channels,), f32)),
        "s_gamma": 1.0 + 0.1 * jax.random.normal(ks[8], (inter_channels,), f32),
        "s_beta": 0.1 * jax.random.normal(ks[9], (inter_channels,), f32),
        "s_mean": 0.05 * jax.random.normal(ks[10], (inter_channels,), f32),
        "s_var": 1.0 + 0.1 * jnp.abs(jax.random.normal(ks[11], (inter_channels,), f32)),
        "a_gamma": jnp.ones((1,), f32),
        "a_beta": jnp.zeros((1,), f32),
        "a_mean": jnp.zeros((1,), f32),
        "a_var": jnp.ones((1,), f32),
    }


if __name__ == "__main__":
    key = jax.random.PRNGKey(0)
    k_g, k_s, k_p = jax.random.split(key, 3)

    B = 2
    gate_channels, skip_channels = 8, 4      # inter_channels = skip_channels // 2 = 2
    Hs = Ws = 16
    Hg = Wg = 8                              # exercises the bilinear-upsample branch

    gate = jax.random.normal(k_g, (B, gate_channels, Hg, Wg), jnp.float32)
    skip = jax.random.normal(k_s, (B, skip_channels, Hs, Ws), jnp.float32)
    params = make_params(k_p, gate_channels, skip_channels)

    # f32 path: tight check against the unfused JAX reference.
    out = jax.block_until_ready(attention_gate(gate, skip, params))
    ref = jax.block_until_ready(_reference_jax(gate, skip, params))
    assert out.shape == (B, skip_channels, Hs, Ws)
    assert jnp.allclose(out, ref, atol=1e-4, rtol=1e-4), "f32 mismatch vs JAX reference"

    # bf16 I/O path (big tensors + matmul weights in bf16, f32 accumulation).
    out_bf16 = jax.block_until_ready(
        attention_gate(gate.astype(jnp.bfloat16), skip.astype(jnp.bfloat16), params))
    assert out_bf16.dtype == jnp.bfloat16
    assert jnp.allclose(out_bf16.astype(jnp.float32), ref, atol=1e-1, rtol=5e-2), \
        "bf16 mismatch vs JAX reference"

    print("KERNEL_OK")
</pallas_src>

<mosaic_0001>
module attributes {stable_mosaic.version = 11 : i64} {
  func.func @_attn_gate_kernel(%arg0: i32, %arg1: i32, %arg2: memref<1x8x256xf32, #tpu.memory_space<vmem>>, %arg3: memref<1x4x256xf32, #tpu.memory_space<vmem>>, %arg4: memref<2x8xf32, #tpu.memory_space<vmem>>, %arg5: memref<2x4xf32, #tpu.memory_space<vmem>>, %arg6: memref<2x1xf32, #tpu.memory_space<vmem>>, %arg7: memref<2x1xf32, #tpu.memory_space<vmem>>, %arg8: memref<1xf32, #tpu.memory_space<smem>>, %arg9: memref<1x4x256xf32, #tpu.memory_space<vmem>>) attributes {dimension_semantics = [#tpu.dimension_semantics<parallel>, #tpu.dimension_semantics<parallel>], iteration_bounds = array<i64: 2, 1>, scalar_prefetch = 0 : i64, scratch_operands = 0 : i64, tpu.core_type = #tpu.core_type<tc>, window_params = [{transform_indices = @transform_0, window_bounds = array<i64: 1, 8, 256>}, {transform_indices = @transform_1, window_bounds = array<i64: 1, 4, 256>}, {pipeline_mode = #tpu.pipeline_mode<synchronous>, transform_indices = @transform_2, window_bounds = array<i64: 2, 8>}, {pipeline_mode = #tpu.pipeline_mode<synchronous>, transform_indices = @transform_3, window_bounds = array<i64: 2, 4>}, {pipeline_mode = #tpu.pipeline_mode<synchronous>, transform_indices = @transform_4, window_bounds = array<i64: 2, 1>}, {pipeline_mode = #tpu.pipeline_mode<synchronous>, transform_indices = @transform_5, window_bounds = array<i64: 2, 1>}, {transform_indices = @transform_6, window_bounds = array<i64: 1>}, {transform_indices = @transform_7, window_bounds = array<i64: 1, 4, 256>}]} {
    %c0 = arith.constant 0 : index
    %c0_0 = arith.constant 0 : index
    %c0_1 = arith.constant 0 : index
    %0 = vector.load %arg3[%c0, %c0_0, %c0_1] : memref<1x4x256xf32, #tpu.memory_space<vmem>>, vector<1x4x256xf32>
    %1 = vector.shape_cast %0 : vector<1x4x256xf32> to vector<4x256xf32>
    %c0_2 = arith.constant 0 : index
    %c0_3 = arith.constant 0 : index
    %2 = vector.load %arg4[%c0_2, %c0_3] : memref<2x8xf32, #tpu.memory_space<vmem>>, vector<2x8xf32>
    %c0_4 = arith.constant 0 : index
    %c0_5 = arith.constant 0 : index
    %c0_6 = arith.constant 0 : index
    %3 = vector.load %arg2[%c0_4, %c0_5, %c0_6] : memref<1x8x256xf32, #tpu.memory_space<vmem>>, vector<1x8x256xf32>
    %4 = vector.shape_cast %3 : vector<1x8x256xf32> to vector<8x256xf32>
    %cst = arith.constant dense<0.000000e+00> : vector<2x256xf32>
    %5 = tpu.matmul %2, %4, %cst {dimension_numbers = #tpu.dot_dimension_numbers<[1], [0], [0], [1], [0, 0, 1, 1], [], []>} : vector<2x8xf32>, vector<8x256xf32>, vector<2x256xf32> -> vector<2x256xf32>
    %c0_7 = arith.constant 0 : index
    %c0_8 = arith.constant 0 : index
    %6 = vector.load %arg5[%c0_7, %c0_8] : memref<2x4xf32, #tpu.memory_space<vmem>>, vector<2x4xf32>
    %cst_9 = arith.constant dense<0.000000e+00> : vector<2x256xf32>
    %7 = tpu.matmul %6, %1, %cst_9 {dimension_numbers = #tpu.dot_dimension_numbers<[1], [0], [0], [1], [0, 0, 1, 1], [], []>} : vector<2x4xf32>, vector<4x256xf32>, vector<2x256xf32> -> vector<2x256xf32>
    %8 = arith.addf %5, %7 : vector<2x256xf32>
    %c0_10 = arith.constant 0 : index
    %c0_11 = arith.constant 0 : index
    %9 = vector.load %arg7[%c0_10, %c0_11] : memref<2x1xf32, #tpu.memory_space<vmem>>, vector<2x1xf32>
    %10 = vector.broadcast %9 : vector<2x1xf32> to vector<2x256xf32>
    %11 = arith.addf %8, %10 : vector<2x256xf32>
    %cst_12 = arith.constant 0.000000e+00 : f32
    %12 = vector.broadcast %cst_12 : f32 to vector<2x256xf32>
    %13 = arith.maximumf %11, %12 : vector<2x256xf32>
    %c0_13 = arith.constant 0 : index
    %c0_14 = arith.constant 0 : index
    %14 = vector.load %arg6[%c0_13, %c0_14] : memref<2x1xf32, #tpu.memory_space<vmem>>, vector<2x1xf32>
    %15 = vector.broadcast %14 : vector<2x1xf32> to vector<2x256xf32>
    %16 = arith.mulf %13, %15 : vector<2x256xf32>
    %cst_15 = arith.constant dense<0.000000e+00> : vector<256xf32>
    %17 = vector.multi_reduction <add>, %16, %cst_15 [0] : vector<2x256xf32> to vector<256xf32>
    %18 = vector.shape_cast %17 : vector<256xf32> to vector<1x256xf32>
    %c0_16 = arith.constant 0 : index
    %19 = memref.load %arg8[%c0_16] : memref<1xf32, #tpu.memory_space<smem>>
    %20 = vector.broadcast %19 : f32 to vector<1x256xf32>
    %21 = arith.addf %18, %20 : vector<1x256xf32>
    %22 = arith.negf %21 : vector<1x256xf32>
    %23 = math.exp %22 : vector<1x256xf32>
    %cst_17 = arith.constant 1.000000e+00 : f32
    %24 = vector.broadcast %cst_17 : f32 to vector<1x256xf32>
    %25 = arith.addf %24, %23 : vector<1x256xf32>
    %26 = arith.divf %24, %25 : vector<1x256xf32>
    %27 = vector.broadcast %26 : vector<1x256xf32> to vector<4x256xf32>
    %28 = arith.mulf %1, %27 : vector<4x256xf32>
    %c0_18 = arith.constant 0 : index
    %c0_19 = arith.constant 0 : index
    %c0_20 = arith.constant 0 : index
    %29 = vector.load %arg9[%c0_18, %c0_19, %c0_20] : memref<1x4x256xf32, #tpu.memory_space<vmem>>, vector<1x4x256xf32>
    %30 = vector.shape_cast %29 : vector<1x4x256xf32> to vector<4x256xf32>
    %31 = vector.shape_cast %28 : vector<4x256xf32> to vector<1x4x256xf32>
    tpu.vector_store %arg9[%c0_18, %c0_19, %c0_20], %31 {strides = array<i32>} : memref<1x4x256xf32, #tpu.memory_space<vmem>>, vector<1x4x256xf32>,
    return
  }
  func.func @transform_0(%arg0: i32, %arg1: i32) -> (i32, i32, i32) {
    %c0_i32 = arith.constant 0 : i32
    %c0_i32_0 = arith.constant 0 : i32
    return %arg0, %c0_i32, %arg1 : i32, i32, i32
  }
  func.func @transform_1(%arg0: i32, %arg1: i32) -> (i32, i32, i32) {
    %c0_i32 = arith.constant 0 : i32
    %c0_i32_0 = arith.constant 0 : i32
    return %arg0, %c0_i32, %arg1 : i32, i32, i32
  }
  func.func @transform_2(%arg0: i32, %arg1: i32) -> (i32, i32) {
    %c0_i32 = arith.constant 0 : i32
    %c0_i32_0 = arith.constant 0 : i32
    %c0_i32_1 = arith.constant 0 : i32
    return %c0_i32, %c0_i32_0 : i32, i32
  }
  func.func @transform_3(%arg0: i32, %arg1: i32) -> (i32, i32) {
    %c0_i32 = arith.constant 0 : i32
    %c0_i32_0 = arith.constant 0 : i32
    %c0_i32_1 = arith.constant 0 : i32
    return %c0_i32, %c0_i32_0 : i32, i32
  }
  func.func @transform_4(%arg0: i32, %arg1: i32) -> (i32, i32) {
    %c0_i32 = arith.constant 0 : i32
    %c0_i32_0 = arith.constant 0 : i32
    %c0_i32_1 = arith.constant 0 : i32
    return %c0_i32, %c0_i32_0 : i32, i32
  }
  func.func @transform_5(%arg0: i32, %arg1: i32) -> (i32, i32) {
    %c0_i32 = arith.constant 0 : i32
    %c0_i32_0 = arith.constant 0 : i32
    %c0_i32_1 = arith.constant 0 : i32
    return %c0_i32, %c0_i32_0 : i32, i32
  }
  func.func @transform_6(%arg0: i32, %arg1: i32) -> i32 {
    %c0_i32 = arith.constant 0 : i32
    %c0_i32_0 = arith.constant 0 : i32
    return %c0_i32 : i32
  }
  func.func @transform_7(%arg0: i32, %arg1: i32) -> (i32, i32, i32) {
    %c0_i32 = arith.constant 0 : i32
    %c0_i32_0 = arith.constant 0 : i32
    return %arg0, %c0_i32, %arg1 : i32, i32, i32
  }
}

</mosaic_0001>

<llo_original>
// kernel: attention_gate.1
$region0: #{attention_gate.1}
  #allocation0 [shape = 'u32[]', space=smem, size = 0x4, offset = 0x4, fixed_abs, tag = 'smem constant byte address 0x4 - core index']
  #allocation1 [shape = 'u32[144,128]{1,0:T(1,128)}', space=vmem, size = 0x12000, scoped, tag = 'internal scratch']
  #allocation2 [shape = 'f32[1]{0:T(128)S(6)}', space=smem, size = 0x200, scoped, tag = 'scoped memory for attention_gate.1']
  %s0 = inlined_call_operand.vmem [shape: f32[2,8,256], index: 0, kind: input, shape index: {}]
  %s1 = inlined_call_operand.vmem [shape: f32[2,4,256], index: 1, kind: input, shape index: {}]
  %s2 = inlined_call_operand.vmem [shape: f32[2,8], index: 2, kind: input, shape index: {}]
  %s3 = inlined_call_operand.vmem [shape: f32[2,4], index: 3, kind: input, shape index: {}]
  %s4 = inlined_call_operand.vmem [shape: f32[2,1], index: 4, kind: input, shape index: {}]
  %s5 = inlined_call_operand.vmem [shape: f32[2,1], index: 5, kind: input, shape index: {}]
  %s6 = inlined_call_operand.<no memory space> [shape: f32[1], index: 6, kind: input, shape index: {}]
  %s7 = inlined_call_operand.vmem [shape: f32[2,4,256], index: 7, kind: output, shape index: {}]
  %s8 = sld [smem:[#allocation0]]
  $region61: #{attention_gate.1} parent=0
    _
  %s10 = ssub.s32 1, %s8
  %s11 = scalar_select 0, %s10, %s8
  %12 = sst [smem:[#allocation2]] %s6
  loop: start=0, step=1, limit=4
  $region2: #{attention_gate.1} parent=0 // loop_pre_header
    _
  $region3: #{attention_gate.1} parent=0 // loop_header
    %s14 = sphi 0, %s18
    %p15 = scmp.ge.s32.totalorder %s14, 4
    %s21 = sphi 0, %s33
    %s22 = sphi 0, %s29
    %s23 = sphi 0, %s21
    %s24 = sphi 0, %s22
    %s25 = sphi 0, %s23
    %s26 = sphi 0, %s24
    %s38 = sphi 0, %s40
    %s41 = sphi 0, %s38
    %s42 = sphi 0, %s41
    %s58 = sphi 0, %s42
    %s66 = sphi 0, %s68
    %s69 = sphi 0, %s66
    %s70 = sphi 0, %s69
    %s86 = sphi 0, %s70
    %s90 = sphi 0, %s90
    %s92 = sphi 0, %s90
    %s93 = sphi 0, %s92
    %s107 = sphi 0, %s93
    %s111 = sphi 0, %s111
    %s113 = sphi 0, %s111
    %s114 = sphi 0, %s113
    %s128 = sphi 0, %s114
    %s132 = sphi 0, %s132
    %s134 = sphi 0, %s132
    %s135 = sphi 0, %s134
    %s149 = sphi 0, %s135
    %s153 = sphi 0, %s153
    %s155 = sphi 0, %s153
    %s156 = sphi 0, %s155
    %s170 = sphi 0, %s156
    %s174 = sphi 0, %s174
    %s176 = sphi 0, %s174
    %s177 = sphi 0, %s176
    %s191 = sphi 0, %s177
    %s199 = sphi 0, %s201
    %s202 = sphi 0, %s199
    %s203 = sphi 0, %s202
    %s219 = sphi 0, %s203
  $region4: #{attention_gate.1} parent=0 // loop_header_branch
    %17 = sbr.rel (%p15) target = $region8
  $region5: #{attention_gate.1} parent=0 // loop_body
    %s19 = ssub.s32 %s14, 1
    %s20 = ssub.s32 %s14, 2
    %s27 = sadd.s32 1, %s22
    %p28 = scmp.ge.s32.totalorder %s27, 1
    %s29 = scalar_select %p28, 0, %s27
    %s30 = sadd.s32 1, %s21
    %s31 = scalar_select %p28, %s30, %s21
    %p32 = scmp.ge.s32.totalorder %s31, 2
    %s33 = scalar_select %p32, 0, %s31
    %s34 = ssub.s32 %s21, %s33
    %s35 = ssub.s32 %s22, %s29
    %s36 = sor.u32 %s34, %s35
    %p37 = scmp.eq.s32.totalorder %s36, 0
    %s39 = sadd.s32 %s38, 1
    %s40 = scalar_select %p37, %s38, %s39
    %p43 = pneg %p37
    %p44 = scmp.eq.s32.totalorder %s14, 1
    %p45 = por %p43, %p44
    %p46 = scmp.ne.s32.totalorder %s38, %s41
    %p47 = scmp.eq.s32.totalorder %s14, 0
    %p48 = por %p46, %p47
    %p49 = scmp.ne.s32.totalorder %s38, %s41
    %p50 = scmp.eq.s32.totalorder %s19, 1
    %p51 = por %p49, %p50
    %p52 = scmp.ne.s32.totalorder %s41, %s42
    %p53 = scmp.eq.s32.totalorder %s19, 0
    %p54 = por %p52, %p53
    %p55 = scmp.ne.s32.totalorder %s41, %s42
    %p56 = scmp.eq.s32.totalorder %s20, 1
    %p57 = por %p55, %p56
    %p59 = scmp.ne.s32.totalorder %s42, %s58
    %p60 = scmp.eq.s32.totalorder %s20, 0
    %p61 = por %p59, %p60
    %s62 = ssub.s32 %s21, %s33
    %s63 = ssub.s32 %s22, %s29
    %s64 = sor.u32 %s62, %s63
    %p65 = scmp.eq.s32.totalorder %s64, 0
    %s67 = sadd.s32 %s66, 1
    %s68 = scalar_select %p65, %s66, %s67
    %p71 = pneg %p65
    %p72 = scmp.eq.s32.totalorder %s14, 1
    %p73 = por %p71, %p72
    %p74 = scmp.ne.s32.totalorder %s66, %s69
    %p75 = scmp.eq.s32.totalorder %s14, 0
    %p76 = por %p74, %p75
    %p77 = scmp.ne.s32.totalorder %s66, %s69
    %p78 = scmp.eq.s32.totalorder %s19, 1
    %p79 = por %p77, %p78
    %p80 = scmp.ne.s32.totalorder %s69, %s70
    %p81 = scmp.eq.s32.totalorder %s19, 0
    %p82 = por %p80, %p81
    %p83 = scmp.ne.s32.totalorder %s69, %s70
    %p84 = scmp.eq.s32.totalorder %s20, 1
    %p85 = por %p83, %p84
    %p87 = scmp.ne.s32.totalorder %s70, %s86
    %p88 = scmp.eq.s32.totalorder %s20, 0
    %p89 = por %p87, %p88
    %s91 = sadd.s32 %s90, 1
    %p94 = scmp.eq.s32.totalorder %s14, 1
    %p95 = scmp.ne.s32.totalorder %s90, %s92
    %p96 = scmp.eq.s32.totalorder %s14, 0
    %p97 = por %p95, %p96
    %p98 = scmp.ne.s32.totalorder %s90, %s92
    %p99 = scmp.eq.s32.totalorder %s19, 1
    %p100 = por %p98, %p99
    %p101 = scmp.ne.s32.totalorder %s92, %s93
    %p102 = scmp.eq.s32.totalorder %s19, 0
    %p103 = por %p101, %p102
    %p104 = scmp.ne.s32.totalorder %s92, %s93
    %p105 = scmp.eq.s32.totalorder %s20, 1
    %p106 = por %p104, %p105
    %p108 = scmp.ne.s32.totalorder %s93, %s107
    %p109 = scmp.eq.s32.totalorder %s20, 0
    %p110 = por %p108, %p109
    %s112 = sadd.s32 %s111, 1
    %p115 = scmp.eq.s32.totalorder %s14, 1
    %p116 = scmp.ne.s32.totalorder %s111, %s113
    %p117 = scmp.eq.s32.totalorder %s14, 0
    %p118 = por %p116, %p117
    %p119 = scmp.ne.s32.totalorder %s111, %s113
    %p120 = scmp.eq.s32.totalorder %s19, 1
    %p121 = por %p119, %p120
    %p122 = scmp.ne.s32.totalorder %s113, %s114
    %p123 = scmp.eq.s32.totalorder %s19, 0
    %p124 = por %p122, %p123
    %p125 = scmp.ne.s32.totalorder %s113, %s114
    %p126 = scmp.eq.s32.totalorder %s20, 1
    %p127 = por %p125, %p126
    %p129 = scmp.ne.s32.totalorder %s114, %s128
    %p130 = scmp.eq.s32.totalorder %s20, 0
    %p131 = por %p129, %p130
    %s133 = sadd.s32 %s132, 1
    %p136 = scmp.eq.s32.totalorder %s14, 1
    %p137 = scmp.ne.s32.totalorder %s132, %s134
    %p138 = scmp.eq.s32.totalorder %s14, 0
    %p139 = por %p137, %p138
    %p140 = scmp.ne.s32.totalorder %s132, %s134
    %p141 = scmp.eq.s32.totalorder %s19, 1
    %p142 = por %p140, %p141
    %p143 = scmp.ne.s32.totalorder %s134, %s135
    %p144 = scmp.eq.s32.totalorder %s19, 0
    %p145 = por %p143, %p144
    %p146 = scmp.ne.s32.totalorder %s134, %s135
    %p147 = scmp.eq.s32.totalorder %s20, 1
    %p148 = por %p146, %p147
    %p150 = scmp.ne.s32.totalorder %s135, %s149
    %p151 = scmp.eq.s32.totalorder %s20, 0
    %p152 = por %p150, %p151
    %s154 = sadd.s32 %s153, 1
    %p157 = scmp.eq.s32.totalorder %s14, 1
    %p158 = scmp.ne.s32.totalorder %s153, %s155
    %p159 = scmp.eq.s32.totalorder %s14, 0
    %p160 = por %p158, %p159
    %p161 = scmp.ne.s32.totalorder %s153, %s155
    %p162 = scmp.eq.s32.totalorder %s19, 1
    %p163 = por %p161, %p162
    %p164 = scmp.ne.s32.totalorder %s155, %s156
    %p165 = scmp.eq.s32.totalorder %s19, 0
    %p166 = por %p164, %p165
    %p167 = scmp.ne.s32.totalorder %s155, %s156
    %p168 = scmp.eq.s32.totalorder %s20, 1
    %p169 = por %p167, %p168
    %p171 = scmp.ne.s32.totalorder %s156, %s170
    %p172 = scmp.eq.s32.totalorder %s20, 0
    %p173 = por %p171, %p172
    %s175 = sadd.s32 %s174, 1
    %p178 = scmp.eq.s32.totalorder %s14, 1
    %p179 = scmp.ne.s32.totalorder %s174, %s176
    %p180 = scmp.eq.s32.totalorder %s14, 0
    %p181 = por %p179, %p180
    %p182 = scmp.ne.s32.totalorder %s174, %s176
    %p183 = scmp.eq.s32.totalorder %s19, 1
    %p184 = por %p182, %p183
    %p185 = scmp.ne.s32.totalorder %s176, %s177
    %p186 = scmp.eq.s32.totalorder %s19, 0
    %p187 = por %p185, %p186
    %p188 = scmp.ne.s32.totalorder %s176, %s177
    %p189 = scmp.eq.s32.totalorder %s20, 1
    %p190 = por %p188, %p189
    %p192 = scmp.ne.s32.totalorder %s177, %s191
    %p193 = scmp.eq.s32.totalorder %s20, 0
    %p194 = por %p192, %p193
    %s195 = ssub.s32 %s21, %s33
    %s196 = ssub.s32 %s22, %s29
    %s197 = sor.u32 %s195, %s196
    %p198 = scmp.eq.s32.totalorder %s197, 0
    %s200 = sadd.s32 %s199, 1
    %s201 = scalar_select %p198, %s199, %s200
    %p204 = pneg %p198
    %p205 = scmp.eq.s32.totalorder %s14, 1
    %p206 = por %p204, %p205
    %p207 = scmp.ne.s32.totalorder %s199, %s202
    %p208 = scmp.eq.s32.totalorder %s14, 0
    %p209 = por %p207, %p208
    %p210 = scmp.ne.s32.totalorder %s199, %s202
    %p211 = scmp.eq.s32.totalorder %s19, 1
    %p212 = por %p210, %p211
    %p213 = scmp.ne.s32.totalorder %s202, %s203
    %p214 = scmp.eq.s32.totalorder %s19, 0
    %p215 = por %p213, %p214
    %p216 = scmp.ne.s32.totalorder %s202, %s203
    %p217 = scmp.eq.s32.totalorder %s20, 1
    %p218 = por %p216, %p217
    %p220 = scmp.ne.s32.totalorder %s203, %s219
    %p221 = scmp.eq.s32.totalorder %s20, 0
    %p222 = por %p220, %p221
    %p223 = scmp.le.s32.totalorder 1, %s14
    %p224 = scmp.lt.s32.totalorder %s14, 3
    %p225 = pnand %p223, %p224
    %p226 = pneg %p225
    // Predicated region
    $region9: #{attention_gate.1} parent=5 // pred_check
      _
    $region10: #{attention_gate.1} parent=5 // pred_check_branch
      %228 = sbr.rel (%p225) target = $region12
    $region11: #{attention_gate.1} parent=5 // pred_region
      %s229 = ssub.s32 %s14, 1
      // Predicated region
      $region13: #{attention_gate.1} parent=11 // pred_check
        %p230 = pneg %p103
      $region14: #{attention_gate.1} parent=11 // pred_check_branch
        %232 = sbr.rel (%p230) target = $region16
      $region15: #{attention_gate.1} parent=11 // pred_region
        _
      $region16: #{attention_gate.1} parent=11 // pred_fallthru
        _
      // Predicated region
      $region17: #{attention_gate.1} parent=11 // pred_check
        %p233 = pneg %p124
      $region18: #{attention_gate.1} parent=11 // pred_check_branch
        %235 = sbr.rel (%p233) target = $region20
      $region19: #{attention_gate.1} parent=11 // pred_region
        _
      $region20: #{attention_gate.1} parent=11 // pred_fallthru
        _
      // Predicated region
      $region21: #{attention_gate.1} parent=11 // pred_check
        %p236 = pneg %p145
      $region22: #{attention_gate.1} parent=11 // pred_check_branch
        %238 = sbr.rel (%p236) target = $region24
      $region23: #{attention_gate.1} parent=11 // pred_region
        _
      $region24: #{attention_gate.1} parent=11 // pred_fallthru
        _
      // Predicated region
      $region25: #{attention_gate.1} parent=11 // pred_check
        %p239 = pneg %p166
      $region26: #{attention_gate.1} parent=11 // pred_check_branch
        %241 = sbr.rel (%p239) target = $region28
      $region27: #{attention_gate.1} parent=11 // pred_region
        _
      $region28: #{attention_gate.1} parent=11 // pred_fallthru
        _
      // Predicated region
      $region29: #{attention_gate.1} parent=11 // pred_check
        %p242 = pneg %p187
      $region30: #{attention_gate.1} parent=11 // pred_check_branch
        %244 = sbr.rel (%p242) target = $region32
      $region31: #{attention_gate.1} parent=11 // pred_region
        _
      $region32: #{attention_gate.1} parent=11 // pred_fallthru
        _
    $region12: #{attention_gate.1} parent=5 // pred_fallthru
      _
    %p245 = scmp.lt.s32.totalorder %s14, 2
    // Predicated region
    $region33: #{attention_gate.1} parent=5 // pred_check
      %p246 = pneg %p245
    $region34: #{attention_gate.1} parent=5 // pred_check_branch
      %248 = sbr.rel (%p246) target = $region36
    $region35: #{attention_gate.1} parent=5 // pred_region
      // Predicated region
      $region37: #{attention_gate.1} parent=35 // pred_check
        %p249 = pneg %p48
      $region38: #{attention_gate.1} parent=35 // pred_check_branch
        %251 = sbr.rel (%p249) target = $region40
      $region39: #{attention_gate.1} parent=35 // pred_region
        %s252 = smul.u32 2, %s22
        %p253 = scmp.lt.s32.totalorder %s21, 1
        %s254 = scalar_select %p253, %s21, 1
        %p255 = scmp.lt.s32.totalorder %s252, 1
        %s256 = scalar_select %p255, %s252, 1
        %s257 = smul.addr %s254, 2
        %s258 = sadd.s32 %s256, %s257
        %s259 = smul.addr %s258, 8
        %s260 = scalar_lea.vmem %s0, %s259
        %s261 = smul.u32 2, %s22
      $region40: #{attention_gate.1} parent=35 // pred_fallthru
        _
      // Predicated region
      $region41: #{attention_gate.1} parent=35 // pred_check
        %p262 = pneg %p76
      $region42: #{attention_gate.1} parent=35 // pred_check_branch
        %264 = sbr.rel (%p262) target = $region44
      $region43: #{attention_gate.1} parent=35 // pred_region
        %s265 = smul.u32 2, %s22
        %p266 = scmp.lt.s32.totalorder %s21, 1
        %s267 = scalar_select %p266, %s21, 1
        %p268 = scmp.lt.s32.totalorder %s265, 1
        %s269 = scalar_select %p268, %s265, 1
        %s270 = smul.addr %s267, 2
        %s271 = sadd.s32 %s269, %s270
        %s272 = smul.addr %s271, 4
        %s273 = scalar_lea.vmem %s1, %s272
        %s274 = smul.u32 2, %s22
      $region44: #{attention_gate.1} parent=35 // pred_fallthru
        _
    $region36: #{attention_gate.1} parent=5 // pred_fallthru
      _
    %p275 = scmp.le.s32.totalorder 1, %s14
    %p276 = scmp.lt.s32.totalorder %s14, 3
    %p277 = pnand %p275, %p276
    %p278 = pneg %p277
    // Predicated region
    $region45: #{attention_gate.1} parent=5 // pred_check
      _
    $region46: #{attention_gate.1} parent=5 // pred_check_branch
      %280 = sbr.rel (%p277) target = $region48
    $region47: #{attention_gate.1} parent=5 // pred_region
      %s281 = ssub.s32 %s14, 1
      %s282 = smul.u32 2, %s24
      %p283 = scmp.lt.s32.totalorder %s23, 1
      %s284 = scalar_select %p283, %s23, 1
      %p285 = scmp.lt.s32.totalorder %s282, 1
      %s286 = scalar_select %p285, %s282, 1
      %s287 = smul.addr %s284, 2
      %s288 = sadd.s32 %s286, %s287
      %s289 = smul.addr %s288, 8
      %s290 = scalar_lea.vmem %s0, %s289
      %p291 = pneg %p54
      %p292 = pneg %p51
      %s293 = smul.u32 2, %s24
      %p294 = scmp.lt.s32.totalorder %s23, 1
      %s295 = scalar_select %p294, %s23, 1
      %p296 = scmp.lt.s32.totalorder %s293, 1
      %s297 = scalar_select %p296, %s293, 1
      %s298 = smul.addr %s295, 2
      %s299 = sadd.s32 %s297, %s298
      %s300 = smul.addr %s299, 4
      %s301 = scalar_lea.vmem %s1, %s300
      %p302 = pneg %p82
      %p303 = pneg %p79
      %p304 = pneg %p103
      %p305 = pneg %p100
      %p306 = pneg %p124
      %p307 = pneg %p121
      %p308 = pneg %p145
      %p309 = pneg %p142
      %p310 = pneg %p166
      %p311 = pneg %p163
      %p312 = pneg %p187
      %p313 = pneg %p184
      %p314 = pneg %p215
      %p315 = pneg %p212
      %s316 = smul.u32 2, %s24
      %p317 = scmp.lt.s32.totalorder %s23, 1
      %s318 = scalar_select %p317, %s23, 1
      %p319 = scmp.lt.s32.totalorder %s316, 1
      %s320 = scalar_select %p319, %s316, 1
      %s321 = smul.addr %s318, 2
      %s322 = sadd.s32 %s320, %s321
      %s323 = smul.addr %s322, 4
      %s324 = scalar_lea.vmem %s7, %s323
      %s325 = smul.u32 2, %s24
      %p326 = scmp.lt.s32.totalorder %s23, 1
      %s327 = scalar_select %p326, %s23, 1
      %p328 = scmp.lt.s32.totalorder %s325, 1
      %s329 = scalar_select %p328, %s325, 1
      %s330 = smul.addr %s327, 2
      %s331 = sadd.s32 %s329, %s330
      %s332 = smul.addr %s331, 8
      %s333 = scalar_lea.vmem %s0, %s332
      %s334 = smul.u32 2, %s24
      %s335 = smul.u32 2, %s24
      %p336 = scmp.lt.s32.totalorder %s23, 1
      %s337 = scalar_select %p336, %s23, 1
      %p338 = scmp.lt.s32.totalorder %s335, 1
      %s339 = scalar_select %p338, %s335, 1
      %s340 = smul.addr %s337, 2
      %s341 = sadd.s32 %s339, %s340
      %s342 = smul.addr %s341, 4
      %s343 = scalar_lea.vmem %s1, %s342
      %s344 = smul.u32 2, %s24
      %s345 = smul.u32 2, %s24
      %p346 = scmp.lt.s32.totalorder %s23, 1
      %s347 = scalar_select %p346, %s23, 1
      %p348 = scmp.lt.s32.totalorder %s345, 1
      %s349 = scalar_select %p348, %s345, 1
      %s350 = smul.addr %s347, 2
      %s351 = sadd.s32 %s349, %s350
      %s352 = smul.addr %s351, 4
      %s353 = scalar_lea.vmem %s7, %s352
      %s354 = smul.u32 2, %s24
      %v355 = vld [vmem:[%s343] sm:$0xff]
      %v356 = vld [vmem:[%s2] sm:$0x3]
      %v357 = vld [vmem:[%s333] sm:$0xff]
      %v358 = vld [vmem:[%s333 + $0x8] sm:$0xff]
      %v359 = vld [vmem:[%s3] sm:$0x3]
      %v361 = vcombine.high %v355, %v355
      %vm362 = vcmask 31744
      %v364 = vsel %vm362, %v359, 0
      %vm366 = vcmask 1043456
      %v367 = vsel %vm366, %v355, 0
      %v369 = vsel %vm366, %v361, 0
      %371 = vmatprep.subr.mxu0 %v369
      %372 = vmatpush1.msra.mxu0 %v367
      %373 = vmatprep.subr.mxu0 0.0
      %374 = vmatpush1.msra.mxu0 0.0
      %375 = vmatprep.subr.mxu0 0.0
      %376 = vmatpush1.msra.mxu0 0.0
      %377 = vmatprep.subr.mxu0 0.0
      %378 = vmatpush1.msra.mxu0 0.0
      %379 = vmatprep.subr.mxu0 0.0
      %380 = vmatpush1.msra.mxu0 0.0
      %381 = vmatprep.subr.mxu0 0.0
      %382 = vmatpush1.msra.mxu0 0.0
      %383 = vmatprep.subr.mxu0 0.0
      %384 = vmatpush1.msra.mxu0 0.0
      %385 = vmatprep.subr.mxu0 0.0
      %386 = vmatpush1.msra.mxu0 0.0
      %387 = vmatprep.subr.mxu0 0.0
      %388 = vmatpush1.msra.mxu0 0.0
      %389 = vmatprep.subr.mxu0 0.0
      %390 = vmatpush1.msra.mxu0 0.0
      %391 = vmatprep.subr.mxu0 0.0
      %392 = vmatpush1.msra.mxu0 0.0
      %393 = vmatprep.subr.mxu0 0.0
      %394 = vmatpush1.msra.mxu0 0.0
      %395 = vmatprep.subr.mxu0 0.0
      %396 = vmatpush1.msra.mxu0 0.0
      %397 = vmatprep.subr.mxu0 0.0
      %398 = vmatpush1.msra.mxu0 0.0
      %399 = vmatprep.subr.mxu0 0.0
      %400 = vmatpush1.msra.mxu0 0.0
      %401 = vmatprep.subr.mxu0 0.0
      %402 = vmatpush1.msra.mxu0 0.0
      %403 = vmatprep.subr.mxu0 0.0
      %404 = vmatpush1.msra.mxu0 0.0
      %405 = vmatprep.subr.mxu0 0.0
      %406 = vmatpush1.msra.mxu0 0.0
      %407 = vmatprep.subr.mxu0 0.0
      %408 = vmatpush1.msra.mxu0 0.0
      %409 = vmatprep.subr.mxu0 0.0
      %410 = vmatpush1.msra.mxu0 0.0
      %411 = vmatprep.subr.mxu0 0.0
      %412 = vmatpush1.msra.mxu0 0.0
      %413 = vmatprep.subr.mxu0 0.0
      %414 = vmatpush1.msra.mxu0 0.0
      %415 = vmatprep.subr.mxu0 0.0
      %416 = vmatpush1.msra.mxu0 0.0
      %417 = vmatprep.subr.mxu0 0.0
      %418 = vmatpush1.msra.mxu0 0.0
      %419 = vmatprep.subr.mxu0 0.0
      %420 = vmatpush1.msra.mxu0 0.0
      %421 = vmatprep.subr.mxu0 0.0
      %422 = vmatpush1.msra.mxu0 0.0
      %423 = vmatprep.subr.mxu0 0.0
      %424 = vmatpush1.msra.mxu0 0.0
      %425 = vmatprep.subr.mxu0 0.0
      %426 = vmatpush1.msra.mxu0 0.0
      %427 = vmatprep.subr.mxu0 0.0
      %428 = vmatpush1.msra.mxu0 0.0
      %429 = vmatprep.subr.mxu0 0.0
      %430 = vmatpush1.msra.mxu0 0.0
      %431 = vmatprep.subr.mxu0 0.0
      %432 = vmatpush1.msra.mxu0 0.0
      %433 = vmatprep.subr.mxu0 0.0
      %434 = vmatpush1.msra.mxu0 0.0
      %435 = vmatprep.mubr.f32.mxu0 0.0
      %436 = vmatmul.mubr.f32.gmra.mrb[0].mxu0 %v364
      %v437 = vpop.f32.mrb[0].mxu0
      %v438 = vadd.f32 0.0, %v437
      %v439 = vpop.f32.mrb[0].mxu0
      %v440 = vadd.f32 0.0, %v439
      %441 = vdwg.mxu0
      %vm442 = vcmask 64512
      %v444 = vsel %vm442, %v356, 0
      %446 = vmatprep.subr.mxu0 %v358
      %447 = vmatpush1.msra.mxu0 %v357
      %448 = vmatprep.subr.mxu0 0.0
      %449 = vmatpush1.msra.mxu0 0.0
      %450 = vmatprep.subr.mxu0 0.0
      %451 = vmatpush1.msra.mxu0 0.0
      %452 = vmatprep.subr.mxu0 0.0
      %453 = vmatpush1.msra.mxu0 0.0
      %454 = vmatprep.subr.mxu0 0.0
      %455 = vmatpush1.msra.mxu0 0.0
      %456 = vmatprep.subr.mxu0 0.0
      %457 = vmatpush1.msra.mxu0 0.0
      %458 = vmatprep.subr.mxu0 0.0
      %459 = vmatpush1.msra.mxu0 0.0
      %460 = vmatprep.subr.mxu0 0.0
      %461 = vmatpush1.msra.mxu0 0.0
      %462 = vmatprep.subr.mxu0 0.0
      %463 = vmatpush1.msra.mxu0 0.0
      %464 = vmatprep.subr.mxu0 0.0
      %465 = vmatpush1.msra.mxu0 0.0
      %466 = vmatprep.subr.mxu0 0.0
      %467 = vmatpush1.msra.mxu0 0.0
      %468 = vmatprep.subr.mxu0 0.0
      %469 = vmatpush1.msra.mxu0 0.0
      %470 = vmatprep.subr.mxu0 0.0
      %471 = vmatpush1.msra.mxu0 0.0
      %472 = vmatprep.subr.mxu0 0.0
      %473 = vmatpush1.msra.mxu0 0.0
      %474 = vmatprep.subr.mxu0 0.0
      %475 = vmatpush1.msra.mxu0 0.0
      %476 = vmatprep.subr.mxu0 0.0
      %477 = vmatpush1.msra.mxu0 0.0
      %478 = vmatprep.subr.mxu0 0.0
      %479 = vmatpush1.msra.mxu0 0.0
      %480 = vmatprep.subr.mxu0 0.0
      %481 = vmatpush1.msra.mxu0 0.0
      %482 = vmatprep.subr.mxu0 0.0
      %483 = vmatpush1.msra.mxu0 0.0
      %484 = vmatprep.subr.mxu0 0.0
      %485 = vmatpush1.msra.mxu0 0.0
      %486 = vmatprep.subr.mxu0 0.0
      %487 = vmatpush1.msra.mxu0 0.0
      %488 = vmatprep.subr.mxu0 0.0
      %489 = vmatpush1.msra.mxu0 0.0
      %490 = vmatprep.subr.mxu0 0.0
      %491 = vmatpush1.msra.mxu0 0.0
      %492 = vmatprep.subr.mxu0 0.0
      %493 = vmatpush1.msra.mxu0 0.0
      %494 = vmatprep.subr.mxu0 0.0
      %495 = vmatpush1.msra.mxu0 0.0
      %496 = vmatprep.subr.mxu0 0.0
      %497 = vmatpush1.msra.mxu0 0.0
      %498 = vmatprep.subr.mxu0 0.0
      %499 = vmatpush1.msra.mxu0 0.0
      %500 = vmatprep.subr.mxu0 0.0
      %501 = vmatpush1.msra.mxu0 0.0
      %502 = vmatprep.subr.mxu0 0.0
      %503 = vmatpush1.msra.mxu0 0.0
      %504 = vmatprep.subr.mxu0 0.0
      %505 = vmatpush1.msra.mxu0 0.0
      %506 = vmatprep.subr.mxu0 0.0
      %507 = vmatpush1.msra.mxu0 0.0
      %508 = vmatprep.subr.mxu0 0.0
      %509 = vmatpush1.msra.mxu0 0.0
      %510 = vmatprep.mubr.f32.mxu0 0.0
      %511 = vmatmul.mubr.f32.gmra.mrb[0].mxu0 %v444
      %v512 = vpop.f32.mrb[0].mxu0
      %v513 = vadd.f32 %v438, %v512
      %v514 = vpop.f32.mrb[0].mxu0
      %v515 = vadd.f32 %v440, %v514
      %516 = vdwg.mxu0
      %v517 = vld [vmem:[%s5] sm:$0x3]
      %519 = vset.pattern.permute.xlu0 0
      %520 = vperm.xlu0 %519, %v517
      %v521 = vpop.permute.xlu0 %520
      %v523 = vadd.f32 %v513, %v521
      %v524 = vadd.f32 %v515, %v521
      %v525 = vmax.f32 %v523, 0.0
      %v526 = vmax.f32 %v524, 0.0
      %v527 = vld [vmem:[%s4] sm:$0x3]
      %529 = vset.pattern.permute.xlu0 0
      %530 = vperm.xlu0 %529, %v527
      %v531 = vpop.permute.xlu0 %530
      %v533 = vmul.f32 %v525, %v531
      %v534 = vmul.f32 %v526, %v531
      %vm535 = vcmask 1041408
      %v536 = vsel %vm535, %v533, 0.0
      %v537 = vrot.slane %v536, 4
      %v538 = vadd.f32 %v536, %v537
      %v539 = vrot.slane %v538, 2
      %v540 = vadd.f32 %v538, %v539
      %v541 = vrot.slane %v540, 1
      %v542 = vadd.f32 %v540, %v541
      %v543 = vsel %vm535, %v534, 0.0
      %v544 = vrot.slane %v543, 4
      %v545 = vadd.f32 %v543, %v544
      %v546 = vrot.slane %v545, 2
      %v547 = vadd.f32 %v545, %v546
      %v548 = vrot.slane %v547, 1
      %v549 = vadd.f32 %v547, %v548
      %s550 = sld [smem:[#allocation2]]
      %v551 = vstv %s550
      %v552 = vadd.f32 %v542, %v551
      %v553 = vadd.f32 %v549, %v551
      %v554 = vxor.u32 %v552, 2147483648
      %v555 = vxor.u32 %v553, 2147483648
      %v556 = vmul.f32 %v554, 1.442695
      %v557 = vpow.pop %v556
      %v558 = vmul.f32 %v555, 1.442695
      %v559 = vpow.pop %v558
      %v560 = vadd.f32 %v557, 1.0
      %v561 = vadd.f32 %v559, 1.0
      %v562 = vrcp.pop %v560
      %v563 = vmul.f32 1.0, %v562
      %v564 = vrcp.pop %v561
      %v565 = vmul.f32 1.0, %v564
      %v568 = vcombine.low %v563, %v565
      %v570 = vmul.f32 %v355, %v568
      %571 = vst [vmem:[%s353] sm:$0xff] %v570
      %s572 = smul.u32 2, %s24
      %p573 = scmp.lt.s32.totalorder %s23, 1
      %s574 = scalar_select %p573, %s23, 1
      %p575 = scmp.lt.s32.totalorder %s572, 1
      %s576 = scalar_select %p575, %s572, 1
      %s577 = smul.addr %s574, 2
      %s578 = sadd.s32 %s576, %s577
      %s579 = smul.addr %s578, 4
      %s580 = scalar_lea.vmem %s7, %s579
      // Predicated region
      $region49: #{attention_gate.1} parent=47 // pred_check
        %p581 = pneg %p212
      $region50: #{attention_gate.1} parent=47 // pred_check_branch
        %583 = sbr.rel (%p581) target = $region52
      $region51: #{attention_gate.1} parent=47 // pred_region
        %s584 = smul.u32 2, %s24
      $region52: #{attention_gate.1} parent=47 // pred_fallthru
        _
    $region48: #{attention_gate.1} parent=5 // pred_fallthru
      _
    %p585 = scmp.le.s32.totalorder 2, %s14
    // Predicated region
    $region53: #{attention_gate.1} parent=5 // pred_check
      %p586 = pneg %p585
    $region54: #{attention_gate.1} parent=5 // pred_check_branch
      %588 = sbr.rel (%p586) target = $region56
    $region55: #{attention_gate.1} parent=5 // pred_region
      %s589 = ssub.s32 %s14, 2
      // Predicated region
      $region57: #{attention_gate.1} parent=55 // pred_check
        %p590 = pneg %p218
      $region58: #{attention_gate.1} parent=55 // pred_check_branch
        %592 = sbr.rel (%p590) target = $region60
      $region59: #{attention_gate.1} parent=55 // pred_region
        %s593 = smul.u32 2, %s26
        %p594 = scmp.lt.s32.totalorder %s25, 1
        %s595 = scalar_select %p594, %s25, 1
        %p596 = scmp.lt.s32.totalorder %s593, 1
        %s597 = scalar_select %p596, %s593, 1
        %s598 = smul.addr %s595, 2
        %s599 = sadd.s32 %s597, %s598
        %s600 = smul.addr %s599, 4
        %s601 = scalar_lea.vmem %s7, %s600
      $region60: #{attention_gate.1} parent=55 // pred_fallthru
        _
    $region56: #{attention_gate.1} parent=5 // pred_fallthru
      _
  $region6: #{attention_gate.1} parent=0 // loop_footer
    %s18 = sadd.s32 1, %s14
  $region7: #{attention_gate.1} parent=0 // loop_footer_branch
    %13 = sbr.rel target = $region3
  $region8: #{attention_gate.1} parent=0 // loop_exit
    _

</llo_original>
